<compile_context>
chip_gen: v5e
topology: v5e:2x2
jax: 0.10.0
libtpu: 0.0.40
codegen_flags: <defaults>
</compile_context>

<pallas_src>
import functools

import jax
import jax.numpy as jnp
from jax.experimental import pallas as pl
from jax.experimental.pallas import tpu as pltpu

IN_FEATURES = 60     # 60-dim vehicle state vector
OUT_FEATURES = 5     # action_size
K_PAD = 64           # padded contraction dim (multiple of sublane/packing tile)
O_PAD = 8            # padded output features (one f32 sublane group)


def dqn_kernel(xt_ref, wt_ref, b_ref, o_ref):
    # xt_ref: (K_PAD, TB) bf16   wt_ref: (O_PAD, K_PAD) bf16
    # b_ref : (O_PAD, 1)  f32    o_ref : (O_PAD, TB)   f32
    y = jnp.dot(wt_ref[...], xt_ref[...],
                preferred_element_type=jnp.float32)      # (O_PAD, TB), f32 acc
    y = y + b_ref[...]                                   # lane-broadcast bias
    y = jnp.maximum(y, 0.0)                              # relu (VPU)
    o_ref[...] = jax.nn.sigmoid(y)                       # sigmoid (EUP), lane-dense store


def _round_up(n, m):
    return ((n + m - 1) // m) * m


@functools.partial(jax.jit, static_argnames=("tb",))
def dqn_forward(x, w, b, *, tb=4096):
    """x: (B, 60) f32, w: (60, 5) f32, b: (5,) f32 -> sigmoid(relu(x @ w + b)), (B, 5) f32."""
    B = x.shape[0]

    # Lane-aligned batch; pick TB so that (a) it's a multiple of 128 lanes,
    # (b) it's capped at `tb`, and (c) mid-size batches split into >= 2 grid
    # steps so the "parallel" axis can shard across both v7x TensorCores.
    b_min = _round_up(B, 128)
    TB = min(tb, max(128, _round_up(pl.cdiv(b_min, 2), 128)))
    B_pad = _round_up(b_min, TB)

    # x: pad batch, cast to bf16, transpose to (K_PAD, B_pad) in one fused op.
    # Padded K rows / batch cols are zero -> they never perturb real outputs.
    xT = jnp.pad(x.astype(jnp.bfloat16).T,
                 ((0, K_PAD - IN_FEATURES), (0, B_pad - B)))

    # W transposed + zero-padded to (O_PAD, K_PAD) bf16; bias to (O_PAD, 1) f32.
    wT = jnp.pad(w.astype(jnp.bfloat16).T,
                 ((0, O_PAD - OUT_FEATURES), (0, K_PAD - IN_FEATURES)))
    b_pad = jnp.pad(b, (0, O_PAD - OUT_FEATURES)).reshape(O_PAD, 1)

    grid = (B_pad // TB,)
    cost = pl.CostEstimate(
        flops=2 * O_PAD * K_PAD * B_pad,
        transcendentals=2 * O_PAD * B_pad,               # sigmoid ~ exp + recip
        bytes_accessed=(K_PAD * B_pad * 2                # xT (bf16)
                        + O_PAD * K_PAD * 2              # W (bf16)
                        + O_PAD * 4                      # b
                        + O_PAD * B_pad * 4),            # out (f32)
    )

    out = pl.pallas_call(
        dqn_kernel,
        out_shape=jax.ShapeDtypeStruct((O_PAD, B_pad), jnp.float32),
        grid_spec=pltpu.PrefetchScalarGridSpec(
            num_scalar_prefetch=0,
            grid=grid,
            in_specs=[
                pl.BlockSpec((K_PAD, TB), lambda i: (0, i)),        # x tile (batch in lanes)
                pl.BlockSpec((O_PAD, K_PAD), lambda i: (0, 0)),     # W (resident)
                pl.BlockSpec((O_PAD, 1), lambda i: (0, 0)),         # b (resident)
            ],
            out_specs=pl.BlockSpec((O_PAD, TB), lambda i: (0, i)),
        ),
        compiler_params=pltpu.CompilerParams(
            dimension_semantics=("parallel",),   # shard batch tiles across TCs (v7x)
            vmem_limit_bytes=32 * 1024 * 1024,   # safe ceiling on v7x's 64 MiB VMEM
        ),
        cost_estimate=cost,
    )(xT, wT, b_pad)

    # Back to (B, 5); padded rows/cols (which hold sigmoid(relu(b)) junk) are dropped.
    return out[:OUT_FEATURES, :B].T


def init_params(key):
    """Deterministic init mimicking nn.Linear default (uniform +/- 1/sqrt(fan_in))."""
    kw, kb = jax.random.split(key)
    bound = 1.0 / jnp.sqrt(float(IN_FEATURES))
    w = jax.random.uniform(kw, (IN_FEATURES, OUT_FEATURES), jnp.float32,
                           minval=-bound, maxval=bound)
    b = jax.random.uniform(kb, (OUT_FEATURES,), jnp.float32,
                           minval=-bound, maxval=bound)
    return w, b


if __name__ == "__main__":
    key = jax.random.PRNGKey(0)
    kx, kp = jax.random.split(key)

    B = 2  # small batch of vehicle-state vectors
    x = jax.random.normal(kx, (B, IN_FEATURES), jnp.float32)
    w, b = init_params(kp)

    out = jax.block_until_ready(dqn_forward(x, w, b))

    # Reference check in plain JAX (same math as the PyTorch forward).
    ref = jax.nn.sigmoid(jnp.maximum(x @ w + b, 0.0))
    assert out.shape == (B, OUT_FEATURES)
    assert jnp.allclose(out, ref, atol=5e-3, rtol=5e-3), "mismatch vs reference"

    # TODO(synk): predict_action / remember are host-side Python (thresholding,
    # replay buffer), not part of the tensor forward pass, so they stay in JAX/Python.

    print("KERNEL_OK")
</pallas_src>

<mosaic_0001>
module attributes {stable_mosaic.version = 11 : i64} {
  func.func @dqn_kernel(%arg0: i32, %arg1: memref<64x128xbf16, #tpu.memory_space<vmem>>, %arg2: memref<8x64xbf16, #tpu.memory_space<vmem>>, %arg3: memref<8x1xf32, #tpu.memory_space<vmem>>, %arg4: memref<8x128xf32, #tpu.memory_space<vmem>>) attributes {dimension_semantics = [#tpu.dimension_semantics<parallel>], iteration_bounds = array<i64: 1>, scalar_prefetch = 0 : i64, scratch_operands = 0 : i64, tpu.core_type = #tpu.core_type<tc>, window_params = [{transform_indices = @transform_0, window_bounds = array<i64: 64, 128>}, {pipeline_mode = #tpu.pipeline_mode<synchronous>, transform_indices = @transform_1, window_bounds = array<i64: 8, 64>}, {pipeline_mode = #tpu.pipeline_mode<synchronous>, transform_indices = @transform_2, window_bounds = array<i64: 8, 1>}, {transform_indices = @transform_3, window_bounds = array<i64: 8, 128>}]} {
    %c0 = arith.constant 0 : index
    %c0_0 = arith.constant 0 : index
    %0 = vector.load %arg2[%c0, %c0_0] : memref<8x64xbf16, #tpu.memory_space<vmem>>, vector<8x64xbf16>
    %c0_1 = arith.constant 0 : index
    %c0_2 = arith.constant 0 : index
    %1 = vector.load %arg1[%c0_1, %c0_2] : memref<64x128xbf16, #tpu.memory_space<vmem>>, vector<64x128xbf16>
    %cst = arith.constant dense<0.000000e+00> : vector<8x128xf32>
    %2 = tpu.matmul %0, %1, %cst {dimension_numbers = #tpu.dot_dimension_numbers<[1], [0], [0], [1], [0, 0, 1, 1], [], []>} : vector<8x64xbf16>, vector<64x128xbf16>, vector<8x128xf32> -> vector<8x128xf32>
    %c0_3 = arith.constant 0 : index
    %c0_4 = arith.constant 0 : index
    %3 = vector.load %arg3[%c0_3, %c0_4] : memref<8x1xf32, #tpu.memory_space<vmem>>, vector<8x1xf32>
    %4 = vector.broadcast %3 : vector<8x1xf32> to vector<8x128xf32>
    %5 = arith.addf %2, %4 : vector<8x128xf32>
    %cst_5 = arith.constant 0.000000e+00 : f32
    %6 = vector.broadcast %cst_5 : f32 to vector<8x128xf32>
    %7 = arith.maximumf %5, %6 : vector<8x128xf32>
    %8 = arith.negf %7 : vector<8x128xf32>
    %9 = math.exp %8 : vector<8x128xf32>
    %cst_6 = arith.constant 1.000000e+00 : f32
    %10 = vector.broadcast %cst_6 : f32 to vector<8x128xf32>
    %11 = arith.addf %10, %9 : vector<8x128xf32>
    %12 = arith.divf %10, %11 : vector<8x128xf32>
    %c0_7 = arith.constant 0 : index
    %c0_8 = arith.constant 0 : index
    %13 = vector.load %arg4[%c0_7, %c0_8] : memref<8x128xf32, #tpu.memory_space<vmem>>, vector<8x128xf32>
    tpu.vector_store %arg4[%c0_7, %c0_8], %12 {strides = array<i32>} : memref<8x128xf32, #tpu.memory_space<vmem>>, vector<8x128xf32>,
    return
  }
  func.func @transform_0(%arg0: i32) -> (i32, i32) {
    %c0_i32 = arith.constant 0 : i32
    %c0_i32_0 = arith.constant 0 : i32
    return %c0_i32, %arg0 : i32, i32
  }
  func.func @transform_1(%arg0: i32) -> (i32, i32) {
    %c0_i32 = arith.constant 0 : i32
    %c0_i32_0 = arith.constant 0 : i32
    %c0_i32_1 = arith.constant 0 : i32
    return %c0_i32, %c0_i32_0 : i32, i32
  }
  func.func @transform_2(%arg0: i32) -> (i32, i32) {
    %c0_i32 = arith.constant 0 : i32
    %c0_i32_0 = arith.constant 0 : i32
    %c0_i32_1 = arith.constant 0 : i32
    return %c0_i32, %c0_i32_0 : i32, i32
  }
  func.func @transform_3(%arg0: i32) -> (i32, i32) {
    %c0_i32 = arith.constant 0 : i32
    %c0_i32_0 = arith.constant 0 : i32
    return %c0_i32, %arg0 : i32, i32
  }
}

</mosaic_0001>

<llo_original>
// kernel: dqn_forward.1
$region0: #{dqn_forward.1}
  #allocation0 [shape = 'u32[]', space=smem, size = 0x4, offset = 0x4, fixed_abs, tag = 'smem constant byte address 0x4 - core index']
  #allocation1 [shape = 'u32[72,128]{1,0:T(1,128)}', space=vmem, size = 0x9000, scoped, tag = 'internal scratch']
  %s0 = inlined_call_operand.vmem [shape: bf16[64,128], index: 0, kind: input, shape index: {}]
  %s1 = inlined_call_operand.vmem [shape: bf16[8,64], index: 1, kind: input, shape index: {}]
  %s2 = inlined_call_operand.vmem [shape: f32[8,1], index: 2, kind: input, shape index: {}]
  %s3 = inlined_call_operand.vmem [shape: f32[8,128], index: 3, kind: output, shape index: {}]
  %s4 = sld [smem:[#allocation0]]
  $region22: #{dqn_forward.1} parent=0
    _
  %s6 = ssub.s32 1, %s4
  %s7 = scalar_select 0, %s6, %s4
  // Predicated region
  $region2: #{dqn_forward.1} parent=0 // pred_check
    _
  $region3: #{dqn_forward.1} parent=0 // pred_check_branch
    %9 = sbr.rel (0) target = $region5
  $region4: #{dqn_forward.1} parent=0 // pred_region
    _
  $region5: #{dqn_forward.1} parent=0 // pred_fallthru
    _
  // Predicated region
  $region6: #{dqn_forward.1} parent=0 // pred_check
    _
  $region7: #{dqn_forward.1} parent=0 // pred_check_branch
    %11 = sbr.rel (0) target = $region9
  $region8: #{dqn_forward.1} parent=0 // pred_region
    _
  $region9: #{dqn_forward.1} parent=0 // pred_fallthru
    _
  // Predicated region
  $region10: #{dqn_forward.1} parent=0 // pred_check
    _
  $region11: #{dqn_forward.1} parent=0 // pred_check_branch
    %13 = sbr.rel (0) target = $region13
  $region12: #{dqn_forward.1} parent=0 // pred_region
    _
  $region13: #{dqn_forward.1} parent=0 // pred_fallthru
    _
  %v15 = vld [vmem:[%s1] sm:$0xf]
  %v16 = vld [vmem:[%s0] sm:$0xf]
  %v17 = vld [vmem:[%s0 + $0x4] sm:$0xf]
  %v18 = vld [vmem:[%s0 + $0x8] sm:$0xf]
  %v19 = vld [vmem:[%s0 + $0xc] sm:$0xf]
  %v20 = vld [vmem:[%s0 + $0x10] sm:$0xf]
  %v21 = vld [vmem:[%s0 + $0x14] sm:$0xf]
  %v22 = vld [vmem:[%s0 + $0x18] sm:$0xf]
  %v23 = vld [vmem:[%s0 + $0x1c] sm:$0xf]
  %v24 = vld [vmem:[%s2] sm:$0xff]
  %26 = vset.pattern.permute.xlu0 0
  %27 = vperm.xlu0 %26, %v24
  %v28 = vpop.permute.xlu0 %27
  %v38 = vunpack.c.l.b16 %v16
  %v39 = vunpack.c.l.b16 %v17
  %v40 = vunpack.c.l.b16 %v18
  %v41 = vunpack.c.l.b16 %v19
  %v42 = vunpack.c.l.b16 %v20
  %v43 = vunpack.c.l.b16 %v21
  %v44 = vunpack.c.l.b16 %v22
  %v45 = vunpack.c.l.b16 %v23
  %v46 = vpack.c.b16 %v39, %v38
  %v47 = vpack.c.b16 %v41, %v40
  %v48 = vpack.c.b16 %v43, %v42
  %v49 = vpack.c.b16 %v45, %v44
  %vm54 = vcmask 523264
  %v56 = vsel %vm54, %v15, 0
  %58 = vmatpush.bf16.msra.mxu0 0
  %59 = vmatpush.bf16.msra.mxu0 0
  %60 = vmatpush.bf16.msra.mxu0 0
  %61 = vmatpush.bf16.msra.mxu0 0
  %62 = vmatpush.bf16.msra.mxu0 %v49
  %63 = vmatpush.bf16.msra.mxu0 %v48
  %64 = vmatpush.bf16.msra.mxu0 %v47
  %65 = vmatpush.bf16.msra.mxu0 %v46
  %66 = vmatmul.bf16.gmra.mxu0 %v56
  %v67 = vpop.f32.mrf.mxu0
  %v68 = vadd.f32 %v28, %v67
  %v69 = vpop.f32.mrf.mxu0
  %70 = vdwg.mxu0
  %v71 = vmax.f32 %v68, 0.0
  %v72 = vxor.u32 %v71, 2147483648
  %v73 = vmul.f32 %v72, 1.442695
  %v74 = vpow.pop %v73
  %v75 = vadd.f32 %v74, 1.0
  %v76 = vrcp.pop %v75
  %v77 = vmul.f32 %v75, %v76
  %v78 = vsub.f32 1.0, %v77
  %v79 = vmul.f32 %v76, %v78
  %v80 = vadd.f32 %v76, %v79
  %vm81 = vweird.f32 %v75
  %vm82 = vweird.f32 %v76
  %vm83 = vmor %vm81, %vm82
  %v84 = vsel %vm83, %v76, %v80
  %v85 = vand.u32 2147483647, %v75
  %vm86 = vcmp.eq.f32.partialorder %v85, 8.507059e+37
  %v87 = vand.u32 %v75, 2147483648
  %v88 = vor.u32 1.1754944e-38, %v87
  %v89 = vsel %vm86, %v88, %v84
  %v90 = vmul.f32 1.0, %v89
  %91 = vst [vmem:[%s3] sm:$0xff] %v90
  // Predicated region
  $region14: #{dqn_forward.1} parent=0 // pred_check
    _
  $region15: #{dqn_forward.1} parent=0 // pred_check_branch
    %93 = sbr.rel (0) target = $region17
  $region16: #{dqn_forward.1} parent=0 // pred_region
    _
  $region17: #{dqn_forward.1} parent=0 // pred_fallthru
    _
  // Predicated region
  $region18: #{dqn_forward.1} parent=0 // pred_check
    _
  $region19: #{dqn_forward.1} parent=0 // pred_check_branch
    %95 = sbr.rel (0) target = $region21
  $region20: #{dqn_forward.1} parent=0 // pred_region
    _
  $region21: #{dqn_forward.1} parent=0 // pred_fallthru
    _

</llo_original>
